<compile_context>
chip_gen: v7x
topology: tpu7x:2x2x1
jax: 0.10.0
libtpu: 0.0.40
codegen_flags: <defaults>
</compile_context>

<pallas_src>
import functools
import math

import jax
import jax.numpy as jnp
from jax.experimental import pallas as pl
from jax.experimental.pallas import tpu as pltpu


def _round_up(x, m):
    return ((x + m - 1) // m) * m


def _mlp_fused_kernel(x_ref, w_ref, b_ref, out_ref, *,
                      in_pad, fused_hidden, num_actions):
    """Fused policy+value MLP over one batch tile.

    w_ref layout (rows, bf16):
      [0 : in_pad]                    fused layer-1 weight       (in_pad, 2H)
      [in_pad : in_pad + 2H]          block-diag layer-2 weight  (2H, 2H)
      [in_pad + 2H : in_pad + 4H]     block-diag head weight     (2H, 2H)
    b_ref layout (rows, f32): 0 = fused b1, 1 = fused b2, 2 = fused head bias.
    """
    x = x_ref[...].astype(jnp.bfloat16)                  # (TILE_B, in_pad)
    b = b_ref[...]                                       # (3, 2H) f32
    b1 = b[0:1, :]
    b2 = b[1:2, :]
    bh = b[2:3, :]

    o2 = in_pad
    o3 = in_pad + fused_hidden
    w1 = w_ref[0:o2, :]                                  # (in_pad, 2H) bf16
    w2 = w_ref[o2:o3, :]                                 # (2H, 2H)     bf16
    wh = w_ref[o3:o3 + fused_hidden, :]                  # (2H, 2H)     bf16

    # Fused hidden layers: lanes 0:H = policy branch, lanes H:2H = value
    # branch. bf16 MXU inputs, f32 accumulation, f32 bias/ReLU.
    h = jnp.dot(x, w1, preferred_element_type=jnp.float32) + b1
    h = jnp.maximum(h, 0.0).astype(jnp.bfloat16)
    h = jnp.dot(h, w2, preferred_element_type=jnp.float32) + b2
    h = jnp.maximum(h, 0.0).astype(jnp.bfloat16)

    # Fused heads: lanes 0:num_actions = mu, lane num_actions = value,
    # remaining lanes are exact zeros (zero weight columns + zero bias).
    head = jnp.dot(h, wh, preferred_element_type=jnp.float32) + bh   # (TILE_B, 2H)

    # tanh only on the mu lanes; the value lane (and zero lanes) pass through.
    lane = jax.lax.broadcasted_iota(jnp.int32, head.shape, 1)
    out_ref[...] = jnp.where(lane < num_actions, jnp.tanh(head), head)


@functools.partial(jax.jit, static_argnames=("num_actions", "tile_b"))
def mlp_forward(x, packed_w, packed_b, *, num_actions, tile_b=None):
    """Runs the fused MLPModel forward. Returns (action_mu, value)."""
    B, in_size = x.shape
    total_rows, fused_hidden = packed_w.shape
    in_pad = total_rows - 2 * fused_hidden

    # Prefer pre-padded inputs at data-prep time; this is only a fallback.
    if in_size != in_pad:
        x = jnp.pad(x, ((0, 0), (0, in_pad - in_size)))

    # Batch tile: fill the MXU M dimension for large batches (256 rows on
    # v6e/v7x); for small batches use one sublane-aligned tile.
    if tile_b is None:
        tile_b = 256 if B >= 256 else _round_up(B, 8)
    b_pad = _round_up(B, tile_b)
    if b_pad != B:
        x = jnp.pad(x, ((0, b_pad - B), (0, 0)))

    kernel = functools.partial(
        _mlp_fused_kernel,
        in_pad=in_pad, fused_hidden=fused_hidden, num_actions=num_actions)

    out = pl.pallas_call(
        kernel,
        out_shape=jax.ShapeDtypeStruct((b_pad, fused_hidden), jnp.float32),
        grid_spec=pltpu.PrefetchScalarGridSpec(
            num_scalar_prefetch=0,
            grid=(b_pad // tile_b,),
            in_specs=[
                # x: tiled along batch, pipelined/double-buffered.
                pl.BlockSpec((tile_b, in_pad), lambda i: (i, 0)),
                # packed weights / biases: constant block index -> DMA'd once,
                # resident in VMEM across all grid steps.
                pl.BlockSpec((total_rows, fused_hidden), lambda i: (0, 0)),
                pl.BlockSpec((3, fused_hidden), lambda i: (0, 0)),
            ],
            out_specs=pl.BlockSpec((tile_b, fused_hidden), lambda i: (i, 0)),
        ),
        compiler_params=pltpu.CompilerParams(
            dimension_semantics=("parallel",)),
    )(x, packed_w, packed_b)

    # Lane-dense slab -> narrow views in the wrapper (cheap XLA slices).
    action_mu = out[:B, :num_actions]
    value = out[:B, num_actions:num_actions + 1]
    return action_mu, value


# ----------------------------------------------------------------------------
# Parameter construction (PyTorch nn.Linear-style init) and host-side packing.
# ----------------------------------------------------------------------------
def _linear_init(key, in_size, out_size):
    """PyTorch nn.Linear init: U(-1/sqrt(fan_in), +1/sqrt(fan_in))."""
    kw, kb = jax.random.split(key)
    bound = 1.0 / math.sqrt(in_size)
    w = jax.random.uniform(kw, (in_size, out_size), jnp.float32, -bound, bound)
    b = jax.random.uniform(kb, (1, out_size), jnp.float32, -bound, bound)
    return w, b


def init_params(key, input_size=24, hidden_sizes=(64, 64), num_actions=2,
                sigma0=1.0):
    keys = jax.random.split(key, 6)
    layer_sizes = (input_size,) + tuple(hidden_sizes)

    params = {}
    params["policy_w1"], params["policy_b1"] = _linear_init(
        keys[0], layer_sizes[0], layer_sizes[1])
    params["policy_w2"], params["policy_b2"] = _linear_init(
        keys[1], layer_sizes[1], layer_sizes[2])
    params["policy_mu_w"], params["policy_mu_b"] = _linear_init(
        keys[2], layer_sizes[-1], num_actions)
    params["value_w1"], params["value_b1"] = _linear_init(
        keys[3], layer_sizes[0], layer_sizes[1])
    params["value_w2"], params["value_b2"] = _linear_init(
        keys[4], layer_sizes[1], layer_sizes[2])
    params["value_head_w"], params["value_head_b"] = _linear_init(
        keys[5], layer_sizes[-1], 1)
    params["std"] = jnp.ones((1, num_actions), jnp.float32) * sigma0
    return params


def pack_params(params, weight_dtype=jnp.bfloat16):
    """Builds the fused weight/bias buffers ONCE on the host.

    Returns:
      packed_w: (in_pad + 4H, 2H) weight_dtype
                rows = [w1_fused ; w2_blockdiag ; head_blockdiag]
      packed_b: (3, 2H) f32   rows = [fused b1 ; fused b2 ; fused head bias]
    """
    pw1, pb1 = params["policy_w1"], params["policy_b1"]
    pw2, pb2 = params["policy_w2"], params["policy_b2"]
    pmu, pmb = params["policy_mu_w"], params["policy_mu_b"]
    vw1, vb1 = params["value_w1"], params["value_b1"]
    vw2, vb2 = params["value_w2"], params["value_b2"]
    vhw, vhb = params["value_head_w"], params["value_head_b"]

    in_size, H = pw1.shape
    na = pmu.shape[1]
    fh = 2 * H                                   # fused hidden width (128)
    in_pad = _round_up(in_size, 8)               # sublane-align layer-1 rows

    # The value head lives in column `na`; make sure it (and mu) fit.
    assert na + 1 <= fh, "num_actions + 1 must fit in the fused lane width"

    # Layer 1: concat along output lanes; padded input rows are exact zeros.
    w1 = jnp.zeros((in_pad, fh), jnp.float32)
    w1 = w1.at[:in_size, :H].set(pw1).at[:in_size, H:].set(vw1)
    # Layer 2: block diagonal (exact-zero off-diagonal blocks).
    w2 = jnp.zeros((fh, fh), jnp.float32)
    w2 = w2.at[:H, :H].set(pw2).at[H:, H:].set(vw2)
    # Heads: block diagonal, columns padded to fh with exact zeros.
    wh = jnp.zeros((fh, fh), jnp.float32)
    wh = wh.at[:H, :na].set(pmu).at[H:, na:na + 1].set(vhw)

    packed_w = jnp.concatenate([w1, w2, wh], axis=0).astype(weight_dtype)

    b1 = jnp.concatenate([pb1, vb1], axis=1)                  # (1, fh)
    b2 = jnp.concatenate([pb2, vb2], axis=1)                  # (1, fh)
    bh = jnp.zeros((1, fh), jnp.float32)
    bh = bh.at[:, :na].set(pmb).at[:, na:na + 1].set(vhb)
    packed_b = jnp.concatenate([b1, b2, bh], axis=0)          # (3, fh) f32

    return packed_w, packed_b


def _reference_forward(x, params, compute_dtype=jnp.bfloat16):
    """Pure-JAX unfused reference matching the kernel's numeric path
    (bf16 MXU inputs, f32 accumulation / bias / ReLU / tanh)."""
    def dot(a, w):
        return jnp.dot(a.astype(compute_dtype), w.astype(compute_dtype),
                       preferred_element_type=jnp.float32)

    h = jnp.maximum(dot(x, params["policy_w1"]) + params["policy_b1"], 0.0)
    h = jnp.maximum(dot(h, params["policy_w2"]) + params["policy_b2"], 0.0)
    mu = jnp.tanh(dot(h, params["policy_mu_w"]) + params["policy_mu_b"])

    g = jnp.maximum(dot(x, params["value_w1"]) + params["value_b1"], 0.0)
    g = jnp.maximum(dot(g, params["value_w2"]) + params["value_b2"], 0.0)
    value = dot(g, params["value_head_w"]) + params["value_head_b"]
    return mu, value


if __name__ == "__main__":
    key = jax.random.PRNGKey(0)
    k_params, k_x = jax.random.split(key)

    input_size = 24
    num_actions = 2
    batch = 8

    params = init_params(
        k_params,
        input_size=input_size,
        hidden_sizes=(64, 64),
        num_actions=num_actions,
        sigma0=1.0,
    )
    packed_w, packed_b = pack_params(params)          # host-side, once (bf16 weights)
    x = jax.random.normal(k_x, (batch, input_size), jnp.float32)

    action_mu, value = mlp_forward(x, packed_w, packed_b,
                                   num_actions=num_actions)
    action_mu = jax.block_until_ready(action_mu)
    value = jax.block_until_ready(value)
    std = params["std"]  # Normal(loc=action_mu, scale=std) built by caller.

    # Correctness vs. a pure-JAX reference on the same precision path.
    ref_mu, ref_value = _reference_forward(x, params)
    assert action_mu.shape == (batch, num_actions)
    assert value.shape == (batch, 1)
    assert std.shape == (1, num_actions)
    assert bool(jnp.all(jnp.abs(action_mu) <= 1.0))
    assert bool(jnp.allclose(action_mu, ref_mu, atol=1e-4, rtol=1e-4))
    assert bool(jnp.allclose(value, ref_value, atol=1e-4, rtol=1e-4))

    # Sanity vs. full-f32 math (bf16 weight/activation quantization only).
    def _f32_ref(x, p):
        h = jnp.maximum(x @ p["policy_w1"] + p["policy_b1"], 0.0)
        h = jnp.maximum(h @ p["policy_w2"] + p["policy_b2"], 0.0)
        mu = jnp.tanh(h @ p["policy_mu_w"] + p["policy_mu_b"])
        g = jnp.maximum(x @ p["value_w1"] + p["value_b1"], 0.0)
        g = jnp.maximum(g @ p["value_w2"] + p["value_b2"], 0.0)
        return mu, g @ p["value_head_w"] + p["value_head_b"]
    f32_mu, f32_value = _f32_ref(x, params)
    assert bool(jnp.allclose(action_mu, f32_mu, atol=5e-2))
    assert bool(jnp.allclose(value, f32_value, atol=5e-2))

    print("KERNEL_OK")
</pallas_src>

<mosaic_0001>
module attributes {stable_mosaic.version = 11 : i64} {
  func.func @_mlp_fused_kernel(%arg0: i32, %arg1: memref<8x24xf32, #tpu.memory_space<vmem>>, %arg2: memref<280x128xbf16, #tpu.memory_space<vmem>>, %arg3: memref<3x128xf32, #tpu.memory_space<vmem>>, %arg4: memref<8x128xf32, #tpu.memory_space<vmem>>) attributes {dimension_semantics = [#tpu.dimension_semantics<parallel>], iteration_bounds = array<i64: 1>, scalar_prefetch = 0 : i64, scratch_operands = 0 : i64, tpu.core_type = #tpu.core_type<tc>, window_params = [{transform_indices = @transform_0, window_bounds = array<i64: 8, 24>}, {pipeline_mode = #tpu.pipeline_mode<synchronous>, transform_indices = @transform_1, window_bounds = array<i64: 280, 128>}, {pipeline_mode = #tpu.pipeline_mode<synchronous>, transform_indices = @transform_2, window_bounds = array<i64: 3, 128>}, {transform_indices = @transform_3, window_bounds = array<i64: 8, 128>}]} {
    %c0 = arith.constant 0 : index
    %c0_0 = arith.constant 0 : index
    %0 = vector.load %arg1[%c0, %c0_0] : memref<8x24xf32, #tpu.memory_space<vmem>>, vector<8x24xf32>
    %1 = arith.truncf %0 : vector<8x24xf32> to vector<8x24xbf16>
    %c0_1 = arith.constant 0 : index
    %c0_2 = arith.constant 0 : index
    %2 = vector.load %arg3[%c0_1, %c0_2] : memref<3x128xf32, #tpu.memory_space<vmem>>, vector<3x128xf32>
    %3 = vector.extract_strided_slice %2 {offsets = [0, 0], sizes = [1, 128], strides = [1, 1]} : vector<3x128xf32> to vector<1x128xf32>
    %4 = vector.extract_strided_slice %2 {offsets = [1, 0], sizes = [1, 128], strides = [1, 1]} : vector<3x128xf32> to vector<1x128xf32>
    %5 = vector.extract_strided_slice %2 {offsets = [2, 0], sizes = [1, 128], strides = [1, 1]} : vector<3x128xf32> to vector<1x128xf32>
    %c0_3 = arith.constant 0 : index
    %c0_4 = arith.constant 0 : index
    %6 = vector.load %arg2[%c0_3, %c0_4] : memref<280x128xbf16, #tpu.memory_space<vmem>>, vector<24x128xbf16>
    %c24 = arith.constant 24 : index
    %c0_5 = arith.constant 0 : index
    %7 = vector.load %arg2[%c24, %c0_5] : memref<280x128xbf16, #tpu.memory_space<vmem>>, vector<128x128xbf16>
    %c152 = arith.constant 152 : index
    %c0_6 = arith.constant 0 : index
    %8 = vector.load %arg2[%c152, %c0_6] : memref<280x128xbf16, #tpu.memory_space<vmem>>, vector<128x128xbf16>
    %cst = arith.constant dense<0.000000e+00> : vector<8x128xf32>
    %9 = tpu.matmul %1, %6, %cst {dimension_numbers = #tpu.dot_dimension_numbers<[1], [0], [0], [1], [0, 0, 1, 1], [], []>} : vector<8x24xbf16>, vector<24x128xbf16>, vector<8x128xf32> -> vector<8x128xf32>
    %10 = vector.broadcast %3 : vector<1x128xf32> to vector<8x128xf32>
    %11 = arith.addf %9, %10 : vector<8x128xf32>
    %cst_7 = arith.constant 0.000000e+00 : f32
    %12 = vector.broadcast %cst_7 : f32 to vector<8x128xf32>
    %13 = arith.maximumf %11, %12 : vector<8x128xf32>
    %14 = arith.truncf %13 : vector<8x128xf32> to vector<8x128xbf16>
    %cst_8 = arith.constant dense<0.000000e+00> : vector<8x128xf32>
    %15 = tpu.matmul %14, %7, %cst_8 {dimension_numbers = #tpu.dot_dimension_numbers<[1], [0], [0], [1], [0, 0, 1, 1], [], []>} : vector<8x128xbf16>, vector<128x128xbf16>, vector<8x128xf32> -> vector<8x128xf32>
    %16 = vector.broadcast %4 : vector<1x128xf32> to vector<8x128xf32>
    %17 = arith.addf %15, %16 : vector<8x128xf32>
    %cst_9 = arith.constant 0.000000e+00 : f32
    %18 = vector.broadcast %cst_9 : f32 to vector<8x128xf32>
    %19 = arith.maximumf %17, %18 : vector<8x128xf32>
    %20 = arith.truncf %19 : vector<8x128xf32> to vector<8x128xbf16>
    %cst_10 = arith.constant dense<0.000000e+00> : vector<8x128xf32>
    %21 = tpu.matmul %20, %8, %cst_10 {dimension_numbers = #tpu.dot_dimension_numbers<[1], [0], [0], [1], [0, 0, 1, 1], [], []>} : vector<8x128xbf16>, vector<128x128xbf16>, vector<8x128xf32> -> vector<8x128xf32>
    %22 = vector.broadcast %5 : vector<1x128xf32> to vector<8x128xf32>
    %23 = arith.addf %21, %22 : vector<8x128xf32>
    %24 = tpu.iota {dimensions = array<i32: 1>} : vector<8x128xi32>
    %c2_i32 = arith.constant 2 : i32
    %25 = vector.broadcast %c2_i32 : i32 to vector<8x128xi32>
    %26 = arith.cmpi slt, %24, %25 : vector<8x128xi32>
    %27 = math.tanh %23 : vector<8x128xf32>
    %28 = arith.select %26, %27, %23 : vector<8x128xi1>, vector<8x128xf32>
    %c0_11 = arith.constant 0 : index
    %c0_12 = arith.constant 0 : index
    %29 = vector.load %arg4[%c0_11, %c0_12] : memref<8x128xf32, #tpu.memory_space<vmem>>, vector<8x128xf32>
    tpu.vector_store %arg4[%c0_11, %c0_12], %28 {strides = array<i32>} : memref<8x128xf32, #tpu.memory_space<vmem>>, vector<8x128xf32>,
    return
  }
  func.func @transform_0(%arg0: i32) -> (i32, i32) {
    %c0_i32 = arith.constant 0 : i32
    %c0_i32_0 = arith.constant 0 : i32
    return %arg0, %c0_i32 : i32, i32
  }
  func.func @transform_1(%arg0: i32) -> (i32, i32) {
    %c0_i32 = arith.constant 0 : i32
    %c0_i32_0 = arith.constant 0 : i32
    %c0_i32_1 = arith.constant 0 : i32
    return %c0_i32, %c0_i32_0 : i32, i32
  }
  func.func @transform_2(%arg0: i32) -> (i32, i32) {
    %c0_i32 = arith.constant 0 : i32
    %c0_i32_0 = arith.constant 0 : i32
    %c0_i32_1 = arith.constant 0 : i32
    return %c0_i32, %c0_i32_0 : i32, i32
  }
  func.func @transform_3(%arg0: i32) -> (i32, i32) {
    %c0_i32 = arith.constant 0 : i32
    %c0_i32_0 = arith.constant 0 : i32
    return %arg0, %c0_i32 : i32, i32
  }
}

</mosaic_0001>

<llo_original>
// kernel: mlp_forward.1
$region0: #{mlp_forward.1}
  #allocation0 [shape = 'u32[]', space=smem, size = 0x4, offset = 0x4, fixed_abs, tag = 'smem constant byte address 0x4 - core index']
  #allocation1 [shape = 'u32[144,128]{1,0:T(1,128)}', space=vmem, size = 0x12000, scoped, tag = 'internal scratch']
  %s0 = inlined_call_operand.hbm [shape: f32[8,24], index: 0, kind: input, shape index: {}]
  %s1 = inlined_call_operand.hbm [shape: bf16[280,128], index: 1, kind: input, shape index: {}]
  %s2 = inlined_call_operand.vmem [shape: f32[3,128], index: 2, kind: input, shape index: {}]
  %s3 = inlined_call_operand.vmem [shape: f32[8,128], index: 3, kind: output, shape index: {}]
  %s4 = sld [smem:[#allocation0]]
  $region30: #{mlp_forward.1} parent=0
    _
  %s6 = ssub.s32 1, %s4
  %s7 = scalar_select 0, %s6, %s4
  $region1: #{mlp_forward.1} parent=0
    #allocation2 [shape = 'u8[4096]{0}', space=vmem, size = 0x1000, scoped, tag = 'input window, operand 0, single buffered']
    #allocation3 [shape = 's32[1]{0}', space=sflag, size = 0x4, scoped, tag = 'scoped memory for mlp_forward.1']
    #allocation4 [shape = 'u8[71680]{0}', space=vmem, size = 0x11800, scoped, tag = 'input window, operand 1, single buffered']
    #allocation5 [shape = 's32[1]{0}', space=sflag, size = 0x4, scoped, tag = 'scoped memory for mlp_forward.1']
    %8 = vsyncpa [#allocation3], 0
    %9 = vsyncpa [#allocation5], 0
    // Predicated region
    $region2: #{mlp_forward.1} parent=1 // pred_check
      _
    $region3: #{mlp_forward.1} parent=1 // pred_check_branch
      %11 = sbr.rel (0) target = $region5
    $region4: #{mlp_forward.1} parent=1 // pred_region
      %s13 = ssub.s32 128, 128
      %14 = vsyncadd [#allocation3], %s13
      %s16 = sshll.u32 [#allocation2], 4
      %s17 = int_to_ptr.vmem [resolvable:$true] %s16
      %19 = dma.hbm_to_vmem [thread:$0]  %s0, 128, %s17, [#allocation3]
    $region5: #{mlp_forward.1} parent=1 // pred_fallthru
      _
    // Predicated region
    $region6: #{mlp_forward.1} parent=1 // pred_check
      _
    $region7: #{mlp_forward.1} parent=1 // pred_check_branch
      %21 = sbr.rel (0) target = $region9
    $region8: #{mlp_forward.1} parent=1 // pred_region
      %s23 = ssub.s32 2240, 2240
      %24 = vsyncadd [#allocation5], %s23
      %s25 = sshll.u32 [#allocation4], 4
      %s26 = int_to_ptr.vmem [resolvable:$true] %s25
      %31 = dma.hbm_to_vmem [thread:$0]  %s1, 2240, %s26, [#allocation5], 64, 64, 4
    $region9: #{mlp_forward.1} parent=1 // pred_fallthru
      _
    // Predicated region
    $region10: #{mlp_forward.1} parent=1 // pred_check
      _
    $region11: #{mlp_forward.1} parent=1 // pred_check_branch
      %33 = sbr.rel (0) target = $region13
    $region12: #{mlp_forward.1} parent=1 // pred_region
      _
    $region13: #{mlp_forward.1} parent=1 // pred_fallthru
      _
    // Predicated region
    $region14: #{mlp_forward.1} parent=1 // pred_check
      _
    $region15: #{mlp_forward.1} parent=1 // pred_check_branch
      %35 = sbr.rel (0) target = $region17
    $region16: #{mlp_forward.1} parent=1 // pred_region
      %36 = dma.done [#allocation3], 128
    $region17: #{mlp_forward.1} parent=1 // pred_fallthru
      _
    // Predicated region
    $region18: #{mlp_forward.1} parent=1 // pred_check
      _
    $region19: #{mlp_forward.1} parent=1 // pred_check_branch
      %38 = sbr.rel (0) target = $region21
    $region20: #{mlp_forward.1} parent=1 // pred_region
      %39 = dma.done [#allocation5], 2240
    $region21: #{mlp_forward.1} parent=1 // pred_fallthru
      _
    %v41 = vld [vmem:[#allocation2] sm:$0xff]
    %v42 = vpack.c.bf16 %v41, %v41
    %v43 = vld [vmem:[%s2] sm:$0x7]
    %v44 = vld [vmem:[#allocation4] sm:$0xf]
    %v45 = vld [vmem:[#allocation4 + $0x4] sm:$0xf]
    %v46 = vld [vmem:[#allocation4 + $0x8] sm:$0xf]
    %v47 = vld [vmem:[#allocation4 + $0xc] sm:$0xf]
    %v48 = vld [vmem:[#allocation4 + $0x10] sm:$0xf]
    %v49 = vld [vmem:[#allocation4 + $0x14] sm:$0xf]
    %v50 = vld [vmem:[#allocation4 + $0x18] sm:$0xf]
    %v51 = vld [vmem:[#allocation4 + $0x1c] sm:$0xf]
    %v52 = vld [vmem:[#allocation4 + $0x20] sm:$0xf]
    %v53 = vld [vmem:[#allocation4 + $0x24] sm:$0xf]
    %v54 = vld [vmem:[#allocation4 + $0x28] sm:$0xf]
    %v55 = vld [vmem:[#allocation4 + $0x2c] sm:$0xf]
    %v56 = vld [vmem:[#allocation4 + $0x30] sm:$0xf]
    %v57 = vld [vmem:[#allocation4 + $0x34] sm:$0xf]
    %v58 = vld [vmem:[#allocation4 + $0x38] sm:$0xf]
    %v59 = vld [vmem:[#allocation4 + $0x3c] sm:$0xf]
    %v60 = vld [vmem:[#allocation4 + $0x40] sm:$0xf]
    %v61 = vld [vmem:[#allocation4 + $0x44] sm:$0xf]
    %v62 = vld [vmem:[#allocation4 + $0x48] sm:$0xf]
    %v63 = vld [vmem:[#allocation4 + $0x4c] sm:$0xf]
    %v64 = vld [vmem:[#allocation4 + $0x50] sm:$0xf]
    %v65 = vld [vmem:[#allocation4 + $0x54] sm:$0xf]
    %v66 = vld [vmem:[#allocation4 + $0x58] sm:$0xf]
    %v67 = vld [vmem:[#allocation4 + $0x5c] sm:$0xf]
    %v68 = vld [vmem:[#allocation4 + $0x60] sm:$0xf]
    %v69 = vld [vmem:[#allocation4 + $0x64] sm:$0xf]
    %v70 = vld [vmem:[#allocation4 + $0x68] sm:$0xf]
    %v71 = vld [vmem:[#allocation4 + $0x6c] sm:$0xf]
    %v72 = vld [vmem:[#allocation4 + $0x70] sm:$0xf]
    %v73 = vld [vmem:[#allocation4 + $0x74] sm:$0xf]
    %v74 = vld [vmem:[#allocation4 + $0x78] sm:$0xf]
    %v75 = vld [vmem:[#allocation4 + $0x7c] sm:$0xf]
    %v76 = vld [vmem:[#allocation4 + $0x80] sm:$0xf]
    %v77 = vld [vmem:[#allocation4 + $0x84] sm:$0xf]
    %v78 = vld [vmem:[#allocation4 + $0x88] sm:$0xf]
    %v79 = vlaneseq
    %v80 = vshrl.u32 %v79, 7
    %v81 = vsub.s32 0, %v80
    %v82 = vrot.slane %v43, %v81
    %v86 = vunpack.c.l.b16 %v44
    %v87 = vunpack.c.l.b16 %v45
    %v88 = vunpack.c.l.b16 %v46
    %v89 = vpack.c.b16 %v87, %v86
    %v90 = vpack.c.b16 %v88, %v88
    %vm92 = vcmask 195584
    %v94 = vsel %vm92, %v42, 0
    %vm96 = vcmask 1043456
    %v98 = vsel %vm96, %v90, 0
    %100 = vmatprep.subr.bf16.mxu0 0
    %101 = vmatpush1.bf16.msra.mxu0 %v89
    %102 = vmatprep.subr.bf16.mxu0 0
    %103 = vmatpush1.bf16.msra.mxu0 %v98
    %104 = vmatprep.subr.bf16.mxu0 0
    %105 = vmatpush1.bf16.msra.mxu0 0
    %106 = vmatprep.subr.bf16.mxu0 0
    %107 = vmatpush1.bf16.msra.mxu0 0
    %108 = vmatprep.subr.bf16.mxu0 0
    %109 = vmatpush1.bf16.msra.mxu0 0
    %110 = vmatprep.subr.bf16.mxu0 0
    %111 = vmatpush1.bf16.msra.mxu0 0
    %112 = vmatprep.subr.bf16.mxu0 0
    %113 = vmatpush1.bf16.msra.mxu0 0
    %114 = vmatprep.subr.bf16.mxu0 0
    %115 = vmatpush1.bf16.msra.mxu0 0
    %116 = vmatprep.subr.bf16.mxu0 0
    %117 = vmatpush1.bf16.msra.mxu0 0
    %118 = vmatprep.subr.bf16.mxu0 0
    %119 = vmatpush1.bf16.msra.mxu0 0
    %120 = vmatprep.subr.bf16.mxu0 0
    %121 = vmatpush1.bf16.msra.mxu0 0
    %122 = vmatprep.subr.bf16.mxu0 0
    %123 = vmatpush1.bf16.msra.mxu0 0
    %124 = vmatprep.subr.bf16.mxu0 0
    %125 = vmatpush1.bf16.msra.mxu0 0
    %126 = vmatprep.subr.bf16.mxu0 0
    %127 = vmatpush1.bf16.msra.mxu0 0
    %128 = vmatprep.subr.bf16.mxu0 0
    %129 = vmatpush1.bf16.msra.mxu0 0
    %130 = vmatprep.subr.bf16.mxu0 0
    %131 = vmatpush1.bf16.msra.mxu0 0
    %132 = vmatprep.mubr.bf16.mxu0 0
    %133 = vmatmul.mubr.bf16.gmra.mrb[0].mxu0 %v94
    %v134 = vpop.f32.mrb[0].mxu0
    %v135 = vadd.f32 %v82, %v134
    %v136 = vpop.f32.mrb[0].mxu0
    %v137 = vpop.f32.mrb[0].mxu0
    %v138 = vpop.f32.mrb[0].mxu0
    %139 = vdwg.mxu0
    %v140 = vmax.f32 %v135, 0.0
    %v141 = vpack.c.bf16 %v140, %v140
    %v142 = vlaneseq
    %v143 = vshrl.u32 %v142, 7
    %v144 = vsub.s32 1, %v143
    %v145 = vrot.slane %v43, %v144
    %v162 = vunpack.c.l.b16 %v47
    %v163 = vunpack.c.l.b16 %v48
    %v164 = vunpack.c.l.b16 %v49
    %v165 = vunpack.c.l.b16 %v50
    %v166 = vunpack.c.l.b16 %v51
    %v167 = vunpack.c.l.b16 %v52
    %v168 = vunpack.c.l.b16 %v53
    %v169 = vunpack.c.l.b16 %v54
    %v170 = vunpack.c.l.b16 %v55
    %v171 = vunpack.c.l.b16 %v56
    %v172 = vunpack.c.l.b16 %v57
    %v173 = vunpack.c.l.b16 %v58
    %v174 = vunpack.c.l.b16 %v59
    %v175 = vunpack.c.l.b16 %v60
    %v176 = vunpack.c.l.b16 %v61
    %v177 = vunpack.c.l.b16 %v62
    %v178 = vpack.c.b16 %v163, %v162
    %v179 = vpack.c.b16 %v165, %v164
    %v180 = vpack.c.b16 %v167, %v166
    %v181 = vpack.c.b16 %v169, %v168
    %v182 = vpack.c.b16 %v171, %v170
    %v183 = vpack.c.b16 %v173, %v172
    %v184 = vpack.c.b16 %v175, %v174
    %v185 = vpack.c.b16 %v177, %v176
    %194 = vmatprep.subr.bf16.mxu0 0
    %195 = vmatpush1.bf16.msra.mxu0 %v178
    %196 = vmatprep.subr.bf16.mxu0 0
    %197 = vmatpush1.bf16.msra.mxu0 %v179
    %198 = vmatprep.subr.bf16.mxu0 0
    %199 = vmatpush1.bf16.msra.mxu0 %v180
    %200 = vmatprep.subr.bf16.mxu0 0
    %201 = vmatpush1.bf16.msra.mxu0 %v181
    %202 = vmatprep.subr.bf16.mxu0 0
    %203 = vmatpush1.bf16.msra.mxu0 %v182
    %204 = vmatprep.subr.bf16.mxu0 0
    %205 = vmatpush1.bf16.msra.mxu0 %v183
    %206 = vmatprep.subr.bf16.mxu0 0
    %207 = vmatpush1.bf16.msra.mxu0 %v184
    %208 = vmatprep.subr.bf16.mxu0 0
    %209 = vmatpush1.bf16.msra.mxu0 %v185
    %210 = vmatprep.subr.bf16.mxu0 0
    %211 = vmatpush1.bf16.msra.mxu0 0
    %212 = vmatprep.subr.bf16.mxu0 0
    %213 = vmatpush1.bf16.msra.mxu0 0
    %214 = vmatprep.subr.bf16.mxu0 0
    %215 = vmatpush1.bf16.msra.mxu0 0
    %216 = vmatprep.subr.bf16.mxu0 0
    %217 = vmatpush1.bf16.msra.mxu0 0
    %218 = vmatprep.subr.bf16.mxu0 0
    %219 = vmatpush1.bf16.msra.mxu0 0
    %220 = vmatprep.subr.bf16.mxu0 0
    %221 = vmatpush1.bf16.msra.mxu0 0
    %222 = vmatprep.subr.bf16.mxu0 0
    %223 = vmatpush1.bf16.msra.mxu0 0
    %224 = vmatprep.subr.bf16.mxu0 0
    %225 = vmatpush1.bf16.msra.mxu0 0
    %226 = vmatprep.mubr.bf16.mxu0 0
    %227 = vmatmul.mubr.bf16.gmra.mrb[0].mxu0 %v141
    %v228 = vpop.f32.mrb[0].mxu0
    %v229 = vadd.f32 %v145, %v228
    %v230 = vpop.f32.mrb[0].mxu0
    %v231 = vpop.f32.mrb[0].mxu0
    %v232 = vpop.f32.mrb[0].mxu0
    %233 = vdwg.mxu0
    %v234 = vmax.f32 %v229, 0.0
    %v235 = vpack.c.bf16 %v234, %v234
    %v236 = vlaneseq
    %v237 = vshrl.u32 %v236, 7
    %v238 = vsub.s32 2, %v237
    %v239 = vrot.slane %v43, %v238
    %v256 = vunpack.c.l.b16 %v63
    %v257 = vunpack.c.l.b16 %v64
    %v258 = vunpack.c.l.b16 %v65
    %v259 = vunpack.c.l.b16 %v66
    %v260 = vunpack.c.l.b16 %v67
    %v261 = vunpack.c.l.b16 %v68
    %v262 = vunpack.c.l.b16 %v69
    %v263 = vunpack.c.l.b16 %v70
    %v264 = vunpack.c.l.b16 %v71
    %v265 = vunpack.c.l.b16 %v72
    %v266 = vunpack.c.l.b16 %v73
    %v267 = vunpack.c.l.b16 %v74
    %v268 = vunpack.c.l.b16 %v75
    %v269 = vunpack.c.l.b16 %v76
    %v270 = vunpack.c.l.b16 %v77
    %v271 = vunpack.c.l.b16 %v78
    %v272 = vpack.c.b16 %v257, %v256
    %v273 = vpack.c.b16 %v259, %v258
    %v274 = vpack.c.b16 %v261, %v260
    %v275 = vpack.c.b16 %v263, %v262
    %v276 = vpack.c.b16 %v265, %v264
    %v277 = vpack.c.b16 %v267, %v266
    %v278 = vpack.c.b16 %v269, %v268
    %v279 = vpack.c.b16 %v271, %v270
    %288 = vmatprep.subr.bf16.mxu0 0
    %289 = vmatpush1.bf16.msra.mxu0 %v272
    %290 = vmatprep.subr.bf16.mxu0 0
    %291 = vmatpush1.bf16.msra.mxu0 %v273
    %292 = vmatprep.subr.bf16.mxu0 0
    %293 = vmatpush1.bf16.msra.mxu0 %v274
    %294 = vmatprep.subr.bf16.mxu0 0
    %295 = vmatpush1.bf16.msra.mxu0 %v275
    %296 = vmatprep.subr.bf16.mxu0 0
    %297 = vmatpush1.bf16.msra.mxu0 %v276
    %298 = vmatprep.subr.bf16.mxu0 0
    %299 = vmatpush1.bf16.msra.mxu0 %v277
    %300 = vmatprep.subr.bf16.mxu0 0
    %301 = vmatpush1.bf16.msra.mxu0 %v278
    %302 = vmatprep.subr.bf16.mxu0 0
    %303 = vmatpush1.bf16.msra.mxu0 %v279
    %304 = vmatprep.subr.bf16.mxu0 0
    %305 = vmatpush1.bf16.msra.mxu0 0
    %306 = vmatprep.subr.bf16.mxu0 0
    %307 = vmatpush1.bf16.msra.mxu0 0
    %308 = vmatprep.subr.bf16.mxu0 0
    %309 = vmatpush1.bf16.msra.mxu0 0
    %310 = vmatprep.subr.bf16.mxu0 0
    %311 = vmatpush1.bf16.msra.mxu0 0
    %312 = vmatprep.subr.bf16.mxu0 0
    %313 = vmatpush1.bf16.msra.mxu0 0
    %314 = vmatprep.subr.bf16.mxu0 0
    %315 = vmatpush1.bf16.msra.mxu0 0
    %316 = vmatprep.subr.bf16.mxu0 0
    %317 = vmatpush1.bf16.msra.mxu0 0
    %318 = vmatprep.subr.bf16.mxu0 0
    %319 = vmatpush1.bf16.msra.mxu0 0
    %320 = vmatprep.mubr.bf16.mxu0 0
    %321 = vmatmul.mubr.bf16.gmra.mrb[0].mxu0 %v235
    %v322 = vpop.f32.mrb[0].mxu0
    %v323 = vadd.f32 %v239, %v322
    %v324 = vpop.f32.mrb[0].mxu0
    %v325 = vpop.f32.mrb[0].mxu0
    %v326 = vpop.f32.mrb[0].mxu0
    %327 = vdwg.mxu0
    %v328 = vlaneseq
    %v329 = vand.u32 %v328, 127
    %vm330 = vcmp.lt.s32.totalorder %v329, 2
    %v331 = vtanh.pop %v323
    %v332 = vsel %vm330, %v331, %v323
    %333 = vst [vmem:[%s3] sm:$0xff] %v332
    // Predicated region
    $region22: #{mlp_forward.1} parent=1 // pred_check
      _
    $region23: #{mlp_forward.1} parent=1 // pred_check_branch
      %335 = sbr.rel (0) target = $region25
    $region24: #{mlp_forward.1} parent=1 // pred_region
      _
    $region25: #{mlp_forward.1} parent=1 // pred_fallthru
      _
    // Predicated region
    $region26: #{mlp_forward.1} parent=1 // pred_check
      _
    $region27: #{mlp_forward.1} parent=1 // pred_check_branch
      %337 = sbr.rel (0) target = $region29
    $region28: #{mlp_forward.1} parent=1 // pred_region
      _
    $region29: #{mlp_forward.1} parent=1 // pred_fallthru
      _
    %338 = vsyncpa [#allocation3], 1
    %339 = vsyncpa [#allocation5], 1

</llo_original>
